<compile_context>
chip_gen: v7x
topology: tpu7x:2x2x1
jax: 0.10.0
libtpu: 0.0.40
codegen_flags: <defaults>
</compile_context>

<pallas_src>
import jax
import jax.numpy as jnp
from jax.experimental import pallas as pl
from jax.experimental.pallas import tpu as pltpu

LANE = 128            # minimum lane-dense last dim (tiny inputs)
LANES = 1024          # preferred last dim
TILE_ROWS = 1024      # 1024 x 1024 f32 = 4 MiB per tile (16 MiB double-buffered in+out)


def _linreg_kernel(w_ref, b_ref, x_ref, o_ref):
    # Scalars live in SMEM (always f32); cast to the tile dtype so the fused
    # w*x+b runs at the input width on the VPU, then store in the output dtype.
    xv = x_ref[...]
    w = w_ref[0].astype(xv.dtype)
    b = b_ref[0].astype(xv.dtype)
    o_ref[...] = (xv * w + b).astype(o_ref.dtype)


def _linreg_pallas(x: jax.Array, weight: jax.Array, bias: jax.Array) -> jax.Array:
    orig_shape = x.shape
    n = x.size

    # Slab layout: keep lanes wide (1024) whenever we have at least 8 full rows;
    # only truly tiny inputs drop to the minimum 128-lane width.
    lanes = LANES if n >= 8 * LANES else LANE
    rows = pl.cdiv(n, lanes)
    padded = rows * lanes                       # pad ONLY to a lane multiple

    flat = x.reshape(-1)
    if padded != n:                             # fast path: skip pad when n % lanes == 0
        flat = jnp.pad(flat, (0, padded - n))
    slab = flat.reshape(rows, lanes)

    # Row tiling: single block (== full row dim, always layout-legal) when the
    # slab is small; otherwise 1024-row tiles with a masked partial edge block.
    tile_rows = rows if rows <= TILE_ROWS else TILE_ROWS
    grid = (pl.cdiv(rows, tile_rows),)

    out = pl.pallas_call(
        _linreg_kernel,
        out_shape=jax.ShapeDtypeStruct((rows, lanes), x.dtype),
        grid=grid,
        in_specs=[
            pl.BlockSpec(memory_space=pltpu.SMEM),                  # weight scalar
            pl.BlockSpec(memory_space=pltpu.SMEM),                  # bias scalar
            pl.BlockSpec((tile_rows, lanes), lambda i: (i, 0)),     # x row tile
        ],
        out_specs=pl.BlockSpec((tile_rows, lanes), lambda i: (i, 0)),
        compiler_params=pltpu.CompilerParams(
            dimension_semantics=("parallel",),   # v7x: shard row tiles across both TCs
            vmem_limit_bytes=32 * 1024 * 1024,   # 4 MiB tiles x 2 bufs x (in+out) = 16 MiB
        ),
    )(weight.astype(jnp.float32), bias.astype(jnp.float32), slab)

    out_flat = out.reshape(-1)
    if padded != n:                             # fast path: skip slice when no padding
        out_flat = out_flat[:n]
    return out_flat.reshape(orig_shape)


def linear_regression_forward(
    x: jax.Array,
    weight: jax.Array,
    bias: jax.Array,
    *,
    min_pallas_elements: int = 64 * 1024,
) -> jax.Array:
    """y = weight * x + bias with scalar weight/bias of shape (1,).

    Output dtype follows x.dtype on both paths. For inputs smaller than
    `min_pallas_elements`, plain XLA fused elementwise is faster than any
    kernel launch; pass 0 to force the Pallas path.
    """
    assert weight.shape == (1,) and bias.shape == (1,)
    if x.size < min_pallas_elements:
        # Match Pallas-path semantics: compute/store in x.dtype.
        return weight.astype(x.dtype) * x + bias.astype(x.dtype)
    return _linreg_pallas(x, weight, bias)


if __name__ == "__main__":
    key = jax.random.PRNGKey(0)
    k_w, k_b, k1, k2, k3, k4 = jax.random.split(key, 6)

    # Deterministic parameter init (mirrors torch.randn(1) shapes).
    weight = jax.random.normal(k_w, (1,), dtype=jnp.float32)
    bias = jax.random.normal(k_b, (1,), dtype=jnp.float32)

    # Small inputs consistent with the linear-regression workflow:
    #  (1000, 1): narrow-lane slab, pad + slice path.
    #  (512, 3) : narrow-lane slab, exact lane multiple -> no pad, no slice.
    #  (128,128): wide 1024-lane slab, exact multiple -> fully copy-free wrapper.
    #  (100,100): wide 1024-lane slab with pad + slice path.
    xs = [
        jax.random.normal(k1, (1000, 1), dtype=jnp.float32),
        jax.random.normal(k2, (512, 3), dtype=jnp.float32),
        jax.random.normal(k3, (128, 128), dtype=jnp.float32),
        jax.random.normal(k4, (100, 100), dtype=jnp.float32),
    ]

    ok = True
    for x in xs:
        # Force the Pallas path even at demo sizes so the kernel runs.
        y = linear_regression_forward(x, weight, bias, min_pallas_elements=0)
        y = jax.block_until_ready(y)
        y_ref = weight * x + bias
        ok &= (y.shape == x.shape) and (y.dtype == x.dtype)
        ok &= bool(jnp.allclose(y, y_ref, atol=1e-6, rtol=1e-6))

    assert ok
    print("KERNEL_OK")
</pallas_src>

<mosaic_0001>
module attributes {stable_mosaic.version = 11 : i64} {
  func.func @_linreg_kernel(%arg0: i32, %arg1: memref<1xf32, #tpu.memory_space<smem>>, %arg2: memref<1xf32, #tpu.memory_space<smem>>, %arg3: memref<8x128xf32, #tpu.memory_space<vmem>>, %arg4: memref<8x128xf32, #tpu.memory_space<vmem>>) attributes {dimension_semantics = [#tpu.dimension_semantics<parallel>], iteration_bounds = array<i64: 1>, scalar_prefetch = 0 : i64, scratch_operands = 0 : i64, tpu.core_type = #tpu.core_type<tc>, window_params = [{transform_indices = @transform_0, window_bounds = array<i64: 1>}, {transform_indices = @transform_1, window_bounds = array<i64: 1>}, {transform_indices = @transform_2, window_bounds = array<i64: 8, 128>}, {transform_indices = @transform_3, window_bounds = array<i64: 8, 128>}]} {
    %c0 = arith.constant 0 : index
    %c0_0 = arith.constant 0 : index
    %0 = vector.load %arg3[%c0, %c0_0] : memref<8x128xf32, #tpu.memory_space<vmem>>, vector<8x128xf32>
    %c0_1 = arith.constant 0 : index
    %1 = memref.load %arg1[%c0_1] : memref<1xf32, #tpu.memory_space<smem>>
    %c0_2 = arith.constant 0 : index
    %2 = memref.load %arg2[%c0_2] : memref<1xf32, #tpu.memory_space<smem>>
    %3 = vector.broadcast %1 : f32 to vector<8x128xf32>
    %4 = arith.mulf %0, %3 : vector<8x128xf32>
    %5 = vector.broadcast %2 : f32 to vector<8x128xf32>
    %6 = arith.addf %4, %5 : vector<8x128xf32>
    %c0_3 = arith.constant 0 : index
    %c0_4 = arith.constant 0 : index
    %7 = vector.load %arg4[%c0_3, %c0_4] : memref<8x128xf32, #tpu.memory_space<vmem>>, vector<8x128xf32>
    tpu.vector_store %arg4[%c0_3, %c0_4], %6 {strides = array<i32>} : memref<8x128xf32, #tpu.memory_space<vmem>>, vector<8x128xf32>,
    return
  }
  func.func @transform_0(%arg0: i32) -> i32 {
    %c0_i32 = arith.constant 0 : i32
    %c0_i32_0 = arith.constant 0 : i32
    return %c0_i32 : i32
  }
  func.func @transform_1(%arg0: i32) -> i32 {
    %c0_i32 = arith.constant 0 : i32
    %c0_i32_0 = arith.constant 0 : i32
    return %c0_i32 : i32
  }
  func.func @transform_2(%arg0: i32) -> (i32, i32) {
    %c0_i32 = arith.constant 0 : i32
    %c0_i32_0 = arith.constant 0 : i32
    return %arg0, %c0_i32 : i32, i32
  }
  func.func @transform_3(%arg0: i32) -> (i32, i32) {
    %c0_i32 = arith.constant 0 : i32
    %c0_i32_0 = arith.constant 0 : i32
    return %arg0, %c0_i32 : i32, i32
  }
}

</mosaic_0001>

<llo_original>
// kernel: tpu_custom_call.1
$region0: #{tpu_custom_call.1}
  #allocation0 [shape = 'u32[]', space=smem, size = 0x4, offset = 0x4, fixed_abs, tag = 'smem constant byte address 0x4 - core index']
  #allocation1 [shape = 'u32[144,128]{1,0:T(1,128)}', space=vmem, size = 0x12000, scoped, tag = 'internal scratch']
  #allocation2 [shape = 'f32[1]{0:T(128)S(6)}', space=smem, size = 0x200, scoped, tag = 'scoped memory for tpu_custom_call.1']
  #allocation3 [shape = 'f32[1]{0:T(128)S(6)}', space=smem, size = 0x200, scoped, tag = 'scoped memory for tpu_custom_call.1']
  %s0 = inlined_call_operand.<no memory space> [shape: f32[1], index: 0, kind: input, shape index: {}]
  %s1 = inlined_call_operand.<no memory space> [shape: f32[1], index: 1, kind: input, shape index: {}]
  %s2 = inlined_call_operand.hbm [shape: f32[8,128], index: 2, kind: input, shape index: {}]
  %s3 = inlined_call_operand.hbm [shape: f32[8,128], index: 3, kind: output, shape index: {}]
  %s4 = sld [smem:[#allocation0]]
  $region26: #{tpu_custom_call.1} parent=0
    _
  %s6 = ssub.s32 1, %s4
  %s7 = scalar_select 0, %s6, %s4
  %8 = sst [smem:[#allocation2]] %s0
  %9 = sst [smem:[#allocation3]] %s1
  $region1: #{tpu_custom_call.1} parent=0
    #allocation4 [shape = 'u8[4096]{0}', space=vmem, size = 0x1000, scoped, tag = 'input window, operand 2, single buffered']
    #allocation5 [shape = 's32[1]{0}', space=sflag, size = 0x4, scoped, tag = 'scoped memory for tpu_custom_call.1']
    #allocation6 [shape = 's32[1]{0}', space=sflag, size = 0x4, scoped, tag = 'scoped memory for tpu_custom_call.1']
    #allocation7 [shape = 'u8[4096]{0}', space=vmem, size = 0x1000, scoped, tag = 'output window, operand 0, single buffered']
    %10 = vsyncpa [#allocation5], 0
    %11 = vsyncpa [#allocation6], 0
    // Predicated region
    $region2: #{tpu_custom_call.1} parent=1 // pred_check
      _
    $region3: #{tpu_custom_call.1} parent=1 // pred_check_branch
      %13 = sbr.rel (0) target = $region5
    $region4: #{tpu_custom_call.1} parent=1 // pred_region
      _
    $region5: #{tpu_custom_call.1} parent=1 // pred_fallthru
      _
    // Predicated region
    $region6: #{tpu_custom_call.1} parent=1 // pred_check
      _
    $region7: #{tpu_custom_call.1} parent=1 // pred_check_branch
      %15 = sbr.rel (0) target = $region9
    $region8: #{tpu_custom_call.1} parent=1 // pred_region
      _
    $region9: #{tpu_custom_call.1} parent=1 // pred_fallthru
      _
    // Predicated region
    $region10: #{tpu_custom_call.1} parent=1 // pred_check
      _
    $region11: #{tpu_custom_call.1} parent=1 // pred_check_branch
      %17 = sbr.rel (0) target = $region13
    $region12: #{tpu_custom_call.1} parent=1 // pred_region
      %s19 = ssub.s32 128, 128
      %20 = vsyncadd [#allocation5], %s19
      %s22 = sshll.u32 [#allocation4], 4
      %s23 = int_to_ptr.vmem [resolvable:$true] %s22
      %25 = dma.hbm_to_vmem [thread:$0]  %s2, 128, %s23, [#allocation5]
    $region13: #{tpu_custom_call.1} parent=1 // pred_fallthru
      _
    // Predicated region
    $region14: #{tpu_custom_call.1} parent=1 // pred_check
      _
    $region15: #{tpu_custom_call.1} parent=1 // pred_check_branch
      %27 = sbr.rel (0) target = $region17
    $region16: #{tpu_custom_call.1} parent=1 // pred_region
      %28 = dma.done [#allocation5], 128
    $region17: #{tpu_custom_call.1} parent=1 // pred_fallthru
      _
    %v29 = vld [vmem:[#allocation4] sm:$0xff]
    %s30 = sld [smem:[#allocation2]]
    %s31 = sld [smem:[#allocation3]]
    %v32 = vstv %s30
    %v33 = vmul.f32 %v29, %v32
    %v34 = vstv %s31
    %v35 = vadd.f32 %v33, %v34
    %36 = vst [vmem:[#allocation7] sm:$0xff] %v35
    // Predicated region
    $region18: #{tpu_custom_call.1} parent=1 // pred_check
      _
    $region19: #{tpu_custom_call.1} parent=1 // pred_check_branch
      %38 = sbr.rel (0) target = $region21
    $region20: #{tpu_custom_call.1} parent=1 // pred_region
      %s40 = ssub.s32 128, 128
      %41 = vsyncadd [#allocation6], %s40
      %s43 = sshll.u32 [#allocation7], 4
      %s44 = int_to_ptr.vmem [resolvable:$true] %s43
      %46 = dma.vmem_to_hbm [thread:$0]  %s44, 128, %s3, [#allocation6]
    $region21: #{tpu_custom_call.1} parent=1 // pred_fallthru
      _
    // Predicated region
    $region22: #{tpu_custom_call.1} parent=1 // pred_check
      _
    $region23: #{tpu_custom_call.1} parent=1 // pred_check_branch
      %48 = sbr.rel (0) target = $region25
    $region24: #{tpu_custom_call.1} parent=1 // pred_region
      %49 = dma.done [#allocation6], 128
    $region25: #{tpu_custom_call.1} parent=1 // pred_fallthru
      _
    %50 = vsyncpa [#allocation5], 1
    %51 = vsyncpa [#allocation6], 1

</llo_original>
